<compile_context>
chip_gen: v7x
topology: tpu7x:2x2x1
jax: 0.10.0
libtpu: 0.0.40
codegen_flags: <defaults>
</compile_context>

<pallas_src>
import functools

import jax
import jax.numpy as jnp
from jax.experimental import pallas as pl
from jax.experimental.pallas import tpu as pltpu

_LANE = 128


# --------------------------------------------------------------------------- #
# Kernel
# --------------------------------------------------------------------------- #
def _sse_kernel(g_ref, r_ref, t_ref, out_ref, acc_g, acc_r, *,
                block_rows, acc_rows, total_rows, steps, needs_mask):
    """Accumulate sum of squared errors for (global-target) and (refine-target).

    Grid = (split, steps); `split` is the (core-)parallel axis, `steps` the
    sequential reduction axis.  Partial SSEs land in out_ref[row=split].
    """
    j = pl.program_id(0)
    i = pl.program_id(1)

    @pl.when(i == 0)
    def _():
        acc_g[...] = jnp.zeros_like(acc_g)
        acc_r[...] = jnp.zeros_like(acc_r)

    t = t_ref[...].astype(jnp.float32)
    dg = g_ref[...].astype(jnp.float32) - t
    dr = r_ref[...].astype(jnp.float32) - t

    folds = block_rows // acc_rows

    def _accumulate(dg_, dr_):
        # Fold the block into a wide VMEM accumulator: pure VALU adds, chain
        # depth = folds (kept small by acc_rows up to 64).
        acc_g[...] += jnp.sum((dg_ * dg_).reshape(folds, acc_rows, _LANE), axis=0)
        acc_r[...] += jnp.sum((dr_ * dr_).reshape(folds, acc_rows, _LANE), axis=0)

    if needs_mask:
        # Only the (at most one per split) tail / duplicated block needs a
        # mask; every other step takes the cheap unmasked path.
        row_start = (j * steps + i) * block_rows
        is_tail = row_start + block_rows > total_rows

        @pl.when(jnp.logical_not(is_tail))
        def _():
            _accumulate(dg, dr)

        @pl.when(is_tail)
        def _():
            row_ids = row_start + jax.lax.broadcasted_iota(
                jnp.int32, (block_rows, _LANE), 0)
            valid = row_ids < total_rows
            # Mask BEFORE squaring so undefined (possibly NaN) OOB rows are
            # zeroed instead of propagating through the multiply.
            _accumulate(jnp.where(valid, dg, 0.0), jnp.where(valid, dr, 0.0))
    else:
        _accumulate(dg, dr)

    @pl.when(i == pl.num_programs(1) - 1)
    def _():
        out_ref[0, 0] = jnp.sum(acc_g[...])
        out_ref[0, 1] = jnp.sum(acc_r[...])


# --------------------------------------------------------------------------- #
# Helpers
# --------------------------------------------------------------------------- #
def _sublane_mult(dtype):
    # Minimal sublane granularity of the packed dtype: f32 -> 8, bf16 -> 16, i8 -> 32.
    return {4: 8, 2: 16, 1: 32}.get(jnp.dtype(dtype).itemsize, 8)


def _num_tensorcores():
    """Conservative TC-per-chip detection (2 only on v7x-class parts)."""
    try:
        kind = jax.devices()[0].device_kind.lower()
    except Exception:  # pragma: no cover - defensive
        return 1
    return 2 if "v7" in kind else 1


def _sse_jnp(a, b):
    d = a.astype(jnp.float32) - b.astype(jnp.float32)
    return jnp.sum(d * d)


# --------------------------------------------------------------------------- #
# Public entry point
# --------------------------------------------------------------------------- #
def cpn_loss(global_preds, refine_preds, targets, vis_mask=None, *,
             tile_rows=4096, min_rows_for_pallas=512, num_tensorcores=None):
    """Pallas implementation of CPNLoss.forward.

    Args are NCHW arrays of identical shape (vis_mask is ignored, matching the
    reference l2_loss).  Returns (loss, loss_global, loss_refine) as f32 scalars.
    """
    assert global_preds.shape == targets.shape == refine_preds.shape
    # TODO(synk): ohem() / l1_loss() are `pass` in the reference module; not implemented.

    n_elems = 1
    for d in targets.shape:
        n_elems *= int(d)

    n_main = n_elems - (n_elems % _LANE)      # lane-aligned prefix (zero-copy case)
    rows = n_main // _LANE

    use_pallas = rows >= max(int(min_rows_for_pallas), 1)

    if not use_pallas:
        # Tiny-input fast path: fused XLA reduction beats pallas fixed cost.
        sse_g = _sse_jnp(global_preds, targets)
        sse_r = _sse_jnp(refine_preds, targets)
    else:
        def _split_flat(x):
            flat = x.reshape(-1)
            if n_main == n_elems:
                return flat.reshape(-1, _LANE), None          # zero-copy path
            return flat[:n_main].reshape(-1, _LANE), flat[n_main:]

        g2, g_tail = _split_flat(global_preds)
        r2, r_tail = _split_flat(refine_preds)
        t2, t_tail = _split_flat(targets)

        sub_mult = max(_sublane_mult(a.dtype) for a in (g2, r2, t2))

        block_rows = min(int(tile_rows), rows)
        block_rows = max(sub_mult, (block_rows // sub_mult) * sub_mult)

        # Accumulator width: largest of {64,32,16,8} dividing block_rows, to
        # keep the dependent-add chain per block short (v7x headroom).
        acc_rows = 64
        while block_rows % acc_rows:
            acc_rows //= 2

        num_blocks = -(-rows // block_rows)                   # cdiv

        if num_tensorcores is None:
            num_tensorcores = _num_tensorcores()
        n_split = 2 if (num_tensorcores >= 2 and num_blocks >= 2) else 1
        steps = -(-num_blocks // n_split)                     # cdiv
        needs_mask = (n_split * steps * block_rows) != rows
        if not needs_mask:
            # needs_mask == False is only safe because it implies rows is an
            # exact multiple of block_rows (no ragged, unmasked last block).
            assert rows % block_rows == 0 and n_split * steps == num_blocks

        def in_map(j, i):
            # Clamp so the DMA block index always refers to an existing block;
            # ragged / duplicated tail rows are masked out inside the kernel.
            return (jnp.minimum(j * steps + i, num_blocks - 1), 0)

        kernel = functools.partial(
            _sse_kernel,
            block_rows=block_rows, acc_rows=acc_rows, total_rows=rows,
            steps=steps, needs_mask=needs_mask)

        bytes_per_row = _LANE * sum(
            jnp.dtype(a.dtype).itemsize for a in (g2, r2, t2))
        cost = pl.CostEstimate(
            flops=6 * rows * _LANE,
            transcendentals=0,
            bytes_accessed=rows * bytes_per_row + 8 * n_split)

        cp_kwargs = dict(dimension_semantics=(
            pltpu.CORE_PARALLEL if n_split > 1 else pltpu.ARBITRARY,
            pltpu.ARBITRARY))
        # Double-buffered inputs + accumulators; raise the scoped-VMEM limit
        # only if a caller-enlarged tile would overflow the v5e 16 MiB default.
        vmem_need = 2 * block_rows * bytes_per_row + 2 * acc_rows * _LANE * 4
        if vmem_need > (14 << 20):
            cp_kwargs["vmem_limit_bytes"] = int(min(vmem_need + (8 << 20), 64 << 20))

        partials = pl.pallas_call(
            kernel,
            out_shape=jax.ShapeDtypeStruct((n_split, 2), jnp.float32),
            grid_spec=pltpu.PrefetchScalarGridSpec(
                num_scalar_prefetch=0,
                grid=(n_split, steps),
                in_specs=[
                    pl.BlockSpec((block_rows, _LANE), in_map),
                    pl.BlockSpec((block_rows, _LANE), in_map),
                    pl.BlockSpec((block_rows, _LANE), in_map),
                ],
                out_specs=pl.BlockSpec((1, 2), lambda j, i: (j, 0),
                                       memory_space=pltpu.SMEM),
                scratch_shapes=[
                    pltpu.VMEM((acc_rows, _LANE), jnp.float32),
                    pltpu.VMEM((acc_rows, _LANE), jnp.float32),
                ],
            ),
            compiler_params=pltpu.CompilerParams(**cp_kwargs),
            cost_estimate=cost,
        )(g2, r2, t2)

        sse_g = jnp.sum(partials[:, 0])
        sse_r = jnp.sum(partials[:, 1])

        if g_tail is not None:
            # Unaligned (<128-element) tail handled with plain jnp; avoids a
            # full-tensor pad copy of all three inputs.
            sse_g = sse_g + _sse_jnp(g_tail, t_tail)
            sse_r = sse_r + _sse_jnp(r_tail, t_tail)

    scale = jnp.float32(0.5 / n_elems)        # mse / 2
    loss_global = sse_g * scale
    loss_refine = sse_r * scale
    loss = loss_global * jnp.float32(0.001) + loss_refine
    return loss, loss_global, loss_refine


# --------------------------------------------------------------------------- #
# Reference + self-test
# --------------------------------------------------------------------------- #
def _reference(g, r, t):
    g = g.astype(jnp.float32); r = r.astype(jnp.float32); t = t.astype(jnp.float32)
    ref_g = jnp.mean((g - t) ** 2) / 2
    ref_r = jnp.mean((r - t) ** 2) / 2
    return ref_g * 0.001 + ref_r, ref_g, ref_r


def _check(out, ref, rtol=1e-5, atol=1e-6):
    for o, e in zip(out, ref):
        assert jnp.allclose(o, e, rtol=rtol, atol=atol), (o, e)


if __name__ == "__main__":
    key = jax.random.PRNGKey(0)

    # --- Case 1: small CPN heatmap shape (B, num_kps, H, W); force pallas path.
    B, C, H, W = 2, 14, 16, 16
    kg, kr, kt, key = jax.random.split(key, 4)
    g = jax.random.normal(kg, (B, C, H, W), dtype=jnp.float32)
    r = jax.random.normal(kr, (B, C, H, W), dtype=jnp.float32)
    t = jax.random.normal(kt, (B, C, H, W), dtype=jnp.float32)
    vis_mask = jnp.ones((B, C), dtype=jnp.float32)   # unused, as in reference l2_loss

    out1 = jax.block_until_ready(
        cpn_loss(g, r, t, vis_mask, min_rows_for_pallas=0))
    _check(out1, _reference(g, r, t))

    # --- Case 2: multi-step reduction with a ragged (masked) tail block.
    B2, C2, H2, W2 = 3, 4, 16, 16                    # 3072 elems -> 24 rows
    kg, kr, kt, key = jax.random.split(key, 4)
    g2 = jax.random.normal(kg, (B2, C2, H2, W2), dtype=jnp.float32)
    r2 = jax.random.normal(kr, (B2, C2, H2, W2), dtype=jnp.float32)
    t2 = jax.random.normal(kt, (B2, C2, H2, W2), dtype=jnp.float32)

    out2 = jax.block_until_ready(
        cpn_loss(g2, r2, t2, None, tile_rows=16, min_rows_for_pallas=0))
    _check(out2, _reference(g2, r2, t2))

    # --- Case 3: lane-unaligned element count -> pallas prefix + jnp tail.
    kg, kr, kt, key = jax.random.split(key, 4)
    g3 = jax.random.normal(kg, (3, 5, 11, 13), dtype=jnp.float32)   # 2145 elems
    r3 = jax.random.normal(kr, (3, 5, 11, 13), dtype=jnp.float32)
    t3 = jax.random.normal(kt, (3, 5, 11, 13), dtype=jnp.float32)

    out3 = jax.block_until_ready(
        cpn_loss(g3, r3, t3, None, tile_rows=8, min_rows_for_pallas=0))
    _check(out3, _reference(g3, r3, t3))

    # --- Case 4: bf16 inputs (in-kernel upcast path).
    kg, kr, kt, key = jax.random.split(key, 4)
    g4 = jax.random.normal(kg, (2, 14, 32, 32), dtype=jnp.bfloat16)
    r4 = jax.random.normal(kr, (2, 14, 32, 32), dtype=jnp.bfloat16)
    t4 = jax.random.normal(kt, (2, 14, 32, 32), dtype=jnp.bfloat16)

    out4 = jax.block_until_ready(
        cpn_loss(g4, r4, t4, None, min_rows_for_pallas=0))
    _check(out4, _reference(g4, r4, t4), rtol=1e-4, atol=1e-5)

    # --- Case 5: tiny-input fast path (default threshold -> plain jnp).
    out5 = jax.block_until_ready(cpn_loss(g, r, t, vis_mask))
    _check(out5, _reference(g, r, t))

    print("KERNEL_OK")
</pallas_src>

<mosaic_0001>
module attributes {stable_mosaic.version = 11 : i64} {
  func.func @_sse_kernel(%arg0: i32, %arg1: i32, %arg2: memref<56x128xf32, #tpu.memory_space<vmem>>, %arg3: memref<56x128xf32, #tpu.memory_space<vmem>>, %arg4: memref<56x128xf32, #tpu.memory_space<vmem>>, %arg5: memref<1x2xf32, #tpu.memory_space<smem>>, %arg6: memref<8x128xf32, #tpu.memory_space<vmem>>, %arg7: memref<8x128xf32, #tpu.memory_space<vmem>>) attributes {dimension_semantics = [#tpu.dimension_semantics<arbitrary>, #tpu.dimension_semantics<arbitrary>], iteration_bounds = array<i64: 1, 1>, scalar_prefetch = 0 : i64, scratch_operands = 2 : i64, tpu.core_type = #tpu.core_type<tc>, window_params = [{transform_indices = @transform_0, window_bounds = array<i64: 56, 128>}, {transform_indices = @transform_1, window_bounds = array<i64: 56, 128>}, {transform_indices = @transform_2, window_bounds = array<i64: 56, 128>}, {transform_indices = @transform_3, window_bounds = array<i64: 1, 2>}]} {
    %c0_i32 = arith.constant 0 : i32
    %0 = arith.cmpi eq, %arg1, %c0_i32 : i32
    %1 = arith.extui %0 : i1 to i32
    %c0_i32_0 = arith.constant 0 : i32
    %2 = arith.cmpi ne, %1, %c0_i32_0 : i32
    scf.if %2 {
      %cst_17 = arith.constant 0.000000e+00 : f32
      %23 = vector.broadcast %cst_17 : f32 to vector<8x128xf32>
      %c0_18 = arith.constant 0 : index
      %c0_19 = arith.constant 0 : index
      %24 = vector.load %arg6[%c0_18, %c0_19] : memref<8x128xf32, #tpu.memory_space<vmem>>, vector<8x128xf32>
      tpu.vector_store %arg6[%c0_18, %c0_19], %23 {strides = array<i32>} : memref<8x128xf32, #tpu.memory_space<vmem>>, vector<8x128xf32>,
      %cst_20 = arith.constant 0.000000e+00 : f32
      %25 = vector.broadcast %cst_20 : f32 to vector<8x128xf32>
      %c0_21 = arith.constant 0 : index
      %c0_22 = arith.constant 0 : index
      %26 = vector.load %arg7[%c0_21, %c0_22] : memref<8x128xf32, #tpu.memory_space<vmem>>, vector<8x128xf32>
      tpu.vector_store %arg7[%c0_21, %c0_22], %25 {strides = array<i32>} : memref<8x128xf32, #tpu.memory_space<vmem>>, vector<8x128xf32>,
    } else {
    }
    %c0 = arith.constant 0 : index
    %c0_1 = arith.constant 0 : index
    %3 = vector.load %arg4[%c0, %c0_1] : memref<56x128xf32, #tpu.memory_space<vmem>>, vector<56x128xf32>
    %c0_2 = arith.constant 0 : index
    %c0_3 = arith.constant 0 : index
    %4 = vector.load %arg2[%c0_2, %c0_3] : memref<56x128xf32, #tpu.memory_space<vmem>>, vector<56x128xf32>
    %5 = arith.subf %4, %3 : vector<56x128xf32>
    %c0_4 = arith.constant 0 : index
    %c0_5 = arith.constant 0 : index
    %6 = vector.load %arg3[%c0_4, %c0_5] : memref<56x128xf32, #tpu.memory_space<vmem>>, vector<56x128xf32>
    %7 = arith.subf %6, %3 : vector<56x128xf32>
    %c0_6 = arith.constant 0 : index
    %c0_7 = arith.constant 0 : index
    %8 = vector.load %arg6[%c0_6, %c0_7] : memref<8x128xf32, #tpu.memory_space<vmem>>, vector<8x128xf32>
    %9 = arith.mulf %5, %5 : vector<56x128xf32>
    %10 = vector.shape_cast %9 : vector<56x128xf32> to vector<7x8x128xf32>
    %cst = arith.constant dense<0.000000e+00> : vector<8x128xf32>
    %11 = vector.multi_reduction <add>, %10, %cst [0] : vector<7x8x128xf32> to vector<8x128xf32>
    %12 = arith.addf %8, %11 : vector<8x128xf32>
    %c0_8 = arith.constant 0 : index
    %c0_9 = arith.constant 0 : index
    %13 = vector.load %arg6[%c0_8, %c0_9] : memref<8x128xf32, #tpu.memory_space<vmem>>, vector<8x128xf32>
    tpu.vector_store %arg6[%c0_8, %c0_9], %12 {strides = array<i32>} : memref<8x128xf32, #tpu.memory_space<vmem>>, vector<8x128xf32>,
    %c0_10 = arith.constant 0 : index
    %c0_11 = arith.constant 0 : index
    %14 = vector.load %arg7[%c0_10, %c0_11] : memref<8x128xf32, #tpu.memory_space<vmem>>, vector<8x128xf32>
    %15 = arith.mulf %7, %7 : vector<56x128xf32>
    %16 = vector.shape_cast %15 : vector<56x128xf32> to vector<7x8x128xf32>
    %cst_12 = arith.constant dense<0.000000e+00> : vector<8x128xf32>
    %17 = vector.multi_reduction <add>, %16, %cst_12 [0] : vector<7x8x128xf32> to vector<8x128xf32>
    %18 = arith.addf %14, %17 : vector<8x128xf32>
    %c0_13 = arith.constant 0 : index
    %c0_14 = arith.constant 0 : index
    %19 = vector.load %arg7[%c0_13, %c0_14] : memref<8x128xf32, #tpu.memory_space<vmem>>, vector<8x128xf32>
    tpu.vector_store %arg7[%c0_13, %c0_14], %18 {strides = array<i32>} : memref<8x128xf32, #tpu.memory_space<vmem>>, vector<8x128xf32>,
    %c0_i32_15 = arith.constant 0 : i32
    %20 = arith.cmpi eq, %arg1, %c0_i32_15 : i32
    %21 = arith.extui %20 : i1 to i32
    %c0_i32_16 = arith.constant 0 : i32
    %22 = arith.cmpi ne, %21, %c0_i32_16 : i32
    scf.if %22 {
      %c0_17 = arith.constant 0 : index
      %c0_18 = arith.constant 0 : index
      %23 = vector.load %arg6[%c0_17, %c0_18] : memref<8x128xf32, #tpu.memory_space<vmem>>, vector<8x128xf32>
      %24 = vector.shape_cast %23 : vector<8x128xf32> to vector<1x8x128xf32>
      %cst_19 = arith.constant dense<0.000000e+00> : vector<1xf32>
      %25 = vector.multi_reduction <add>, %24, %cst_19 [1, 2] : vector<1x8x128xf32> to vector<1xf32>
      %26 = vector.shape_cast %25 : vector<1xf32> to vector<1x1x1xf32>
      %27 = vector.extract %26[0, 0, 0] : f32 from vector<1x1x1xf32>
      %c0_20 = arith.constant 0 : index
      %c0_21 = arith.constant 0 : index
      %28 = memref.load %arg5[%c0_20, %c0_21] : memref<1x2xf32, #tpu.memory_space<smem>>
      memref.store %27, %arg5[%c0_20, %c0_21] : memref<1x2xf32, #tpu.memory_space<smem>>
      %c0_22 = arith.constant 0 : index
      %c0_23 = arith.constant 0 : index
      %29 = vector.load %arg7[%c0_22, %c0_23] : memref<8x128xf32, #tpu.memory_space<vmem>>, vector<8x128xf32>
      %30 = vector.shape_cast %29 : vector<8x128xf32> to vector<1x8x128xf32>
      %cst_24 = arith.constant dense<0.000000e+00> : vector<1xf32>
      %31 = vector.multi_reduction <add>, %30, %cst_24 [1, 2] : vector<1x8x128xf32> to vector<1xf32>
      %32 = vector.shape_cast %31 : vector<1xf32> to vector<1x1x1xf32>
      %33 = vector.extract %32[0, 0, 0] : f32 from vector<1x1x1xf32>
      %c0_25 = arith.constant 0 : index
      %c1 = arith.constant 1 : index
      %34 = memref.load %arg5[%c0_25, %c1] : memref<1x2xf32, #tpu.memory_space<smem>>
      memref.store %33, %arg5[%c0_25, %c1] : memref<1x2xf32, #tpu.memory_space<smem>>
    } else {
    }
    return
  }
  func.func @transform_0(%arg0: i32, %arg1: i32) -> (i32, i32) {
    %c1_i32 = arith.constant 1 : i32
    %0 = arith.muli %arg0, %c1_i32 : i32
    %1 = arith.addi %0, %arg1 : i32
    %c0_i32 = arith.constant 0 : i32
    %2 = arith.minsi %1, %c0_i32 : i32
    %c0_i32_0 = arith.constant 0 : i32
    %c0_i32_1 = arith.constant 0 : i32
    return %2, %c0_i32_0 : i32, i32
  }
  func.func @transform_1(%arg0: i32, %arg1: i32) -> (i32, i32) {
    %c1_i32 = arith.constant 1 : i32
    %0 = arith.muli %arg0, %c1_i32 : i32
    %1 = arith.addi %0, %arg1 : i32
    %c0_i32 = arith.constant 0 : i32
    %2 = arith.minsi %1, %c0_i32 : i32
    %c0_i32_0 = arith.constant 0 : i32
    %c0_i32_1 = arith.constant 0 : i32
    return %2, %c0_i32_0 : i32, i32
  }
  func.func @transform_2(%arg0: i32, %arg1: i32) -> (i32, i32) {
    %c1_i32 = arith.constant 1 : i32
    %0 = arith.muli %arg0, %c1_i32 : i32
    %1 = arith.addi %0, %arg1 : i32
    %c0_i32 = arith.constant 0 : i32
    %2 = arith.minsi %1, %c0_i32 : i32
    %c0_i32_0 = arith.constant 0 : i32
    %c0_i32_1 = arith.constant 0 : i32
    return %2, %c0_i32_0 : i32, i32
  }
  func.func @transform_3(%arg0: i32, %arg1: i32) -> (i32, i32) {
    %c0_i32 = arith.constant 0 : i32
    %c0_i32_0 = arith.constant 0 : i32
    return %arg0, %c0_i32 : i32, i32
  }
}

</mosaic_0001>

<llo_original>
// kernel: tpu_custom_call.1
$region0: #{tpu_custom_call.1}
  #allocation0 [shape = 'u32[]', space=smem, size = 0x4, offset = 0x4, fixed_abs, tag = 'smem constant byte address 0x4 - core index']
  #allocation1 [shape = 'u32[144,128]{1,0:T(1,128)}', space=vmem, size = 0x12000, scoped, tag = 'internal scratch']
  #allocation2 [shape = 'f32[8,128]{1,0:T(8,128)}', space=vmem, size = 0x1000, scoped, tag = 'scratch operand']
  #allocation3 [shape = 'f32[8,128]{1,0:T(8,128)}', space=vmem, size = 0x1000, scoped, tag = 'scratch operand']
  %s0 = inlined_call_operand.hbm [shape: f32[56,128], index: 0, kind: input, shape index: {}]
  %s1 = inlined_call_operand.hbm [shape: f32[56,128], index: 1, kind: input, shape index: {}]
  %s2 = inlined_call_operand.hbm [shape: f32[56,128], index: 2, kind: input, shape index: {}]
  %s3 = inlined_call_operand.hbm [shape: f32[1,2], index: 3, kind: output, shape index: {}]
  %s4 = sld [smem:[#allocation0]]
  $region42: #{tpu_custom_call.1} parent=0
    _
  %s6 = ssub.s32 1, %s4
  %s7 = scalar_select 0, %s6, %s4
  $region1: #{tpu_custom_call.1} parent=0
    #allocation4 [shape = 'u8[28672]{0}', space=vmem, size = 0x7000, scoped, tag = 'input window, operand 0, single buffered']
    #allocation5 [shape = 's32[1]{0}', space=sflag, size = 0x4, scoped, tag = 'scoped memory for tpu_custom_call.1']
    #allocation6 [shape = 's32[1]{0}', space=sflag, size = 0x4, scoped, tag = 'scoped memory for tpu_custom_call.1']
    #allocation7 [shape = 'u8[28672]{0}', space=vmem, size = 0x7000, scoped, tag = 'input window, operand 1, single buffered']
    #allocation8 [shape = 's32[1]{0}', space=sflag, size = 0x4, scoped, tag = 'scoped memory for tpu_custom_call.1']
    #allocation9 [shape = 'u8[28672]{0}', space=vmem, size = 0x7000, scoped, tag = 'input window, operand 2, single buffered']
    #allocation10 [shape = 'u8[512]{0}', space=smem, size = 0x200, scoped, tag = 'output window, operand 0, single buffered']
    %8 = vsyncpa [#allocation5], 0
    %9 = vsyncpa [#allocation8], 0
    %10 = vsyncpa [#allocation6], 0
    // Predicated region
    $region2: #{tpu_custom_call.1} parent=1 // pred_check
      _
    $region3: #{tpu_custom_call.1} parent=1 // pred_check_branch
      %12 = sbr.rel (0) target = $region5
    $region4: #{tpu_custom_call.1} parent=1 // pred_region
      %s13 = sadd.s32 0, 0
      %p14 = scmp.lt.s32.totalorder %s13, 0
      %s15 = scalar_select %p14, %s13, 0
      %s16 = smul.u32 7, %s15
      %s18 = ssub.s32 896, 896
      %19 = vsyncadd [#allocation5], %s18
      %s20 = smul.addr %s16, 128
      %s21 = scalar_lea.hbm %s0, %s20
      %s22 = sshll.u32 [#allocation4], 4
      %s23 = int_to_ptr.vmem [resolvable:$true] %s22
      %28 = dma.hbm_to_vmem [thread:$0]  %s21, 896, %s23, [#allocation5], 128, 128, 8
    $region5: #{tpu_custom_call.1} parent=1 // pred_fallthru
      _
    // Predicated region
    $region6: #{tpu_custom_call.1} parent=1 // pred_check
      _
    $region7: #{tpu_custom_call.1} parent=1 // pred_check_branch
      %30 = sbr.rel (0) target = $region9
    $region8: #{tpu_custom_call.1} parent=1 // pred_region
      %s31 = sadd.s32 0, 0
      %p32 = scmp.lt.s32.totalorder %s31, 0
      %s33 = scalar_select %p32, %s31, 0
      %s34 = smul.u32 7, %s33
      %s36 = ssub.s32 896, 896
      %37 = vsyncadd [#allocation8], %s36
      %s38 = smul.addr %s34, 128
      %s39 = scalar_lea.hbm %s1, %s38
      %s40 = sshll.u32 [#allocation7], 4
      %s41 = int_to_ptr.vmem [resolvable:$true] %s40
      %46 = dma.hbm_to_vmem [thread:$0]  %s39, 896, %s41, [#allocation8], 128, 128, 8
    $region9: #{tpu_custom_call.1} parent=1 // pred_fallthru
      _
    // Predicated region
    $region10: #{tpu_custom_call.1} parent=1 // pred_check
      _
    $region11: #{tpu_custom_call.1} parent=1 // pred_check_branch
      %48 = sbr.rel (0) target = $region13
    $region12: #{tpu_custom_call.1} parent=1 // pred_region
      %s49 = sadd.s32 0, 0
      %p50 = scmp.lt.s32.totalorder %s49, 0
      %s51 = scalar_select %p50, %s49, 0
      %s52 = smul.u32 7, %s51
      %s54 = ssub.s32 896, 896
      %55 = vsyncadd [#allocation8], %s54
      %s56 = smul.addr %s52, 128
      %s57 = scalar_lea.hbm %s2, %s56
      %s58 = sshll.u32 [#allocation9], 4
      %s59 = int_to_ptr.vmem [resolvable:$true] %s58
      %64 = dma.hbm_to_vmem [thread:$0]  %s57, 896, %s59, [#allocation8], 128, 128, 8
    $region13: #{tpu_custom_call.1} parent=1 // pred_fallthru
      _
    // Predicated region
    $region14: #{tpu_custom_call.1} parent=1 // pred_check
      _
    $region15: #{tpu_custom_call.1} parent=1 // pred_check_branch
      %66 = sbr.rel (0) target = $region17
    $region16: #{tpu_custom_call.1} parent=1 // pred_region
      %67 = dma.done [#allocation5], 896
    $region17: #{tpu_custom_call.1} parent=1 // pred_fallthru
      _
    // Predicated region
    $region18: #{tpu_custom_call.1} parent=1 // pred_check
      _
    $region19: #{tpu_custom_call.1} parent=1 // pred_check_branch
      %69 = sbr.rel (0) target = $region21
    $region20: #{tpu_custom_call.1} parent=1 // pred_region
      %70 = dma.done [#allocation8], 896
    $region21: #{tpu_custom_call.1} parent=1 // pred_fallthru
      _
    // Predicated region
    $region22: #{tpu_custom_call.1} parent=1 // pred_check
      _
    $region23: #{tpu_custom_call.1} parent=1 // pred_check_branch
      %72 = sbr.rel (0) target = $region25
    $region24: #{tpu_custom_call.1} parent=1 // pred_region
      %73 = dma.done [#allocation8], 896
    $region25: #{tpu_custom_call.1} parent=1 // pred_fallthru
      _
    %s74 = sadd.s32 0, 0
    %p75 = scmp.lt.s32.totalorder %s74, 0
    %s76 = scalar_select %p75, %s74, 0
    %s77 = smul.u32 7, %s76
    %s78 = sadd.s32 0, 0
    %p79 = scmp.lt.s32.totalorder %s78, 0
    %s80 = scalar_select %p79, %s78, 0
    %s81 = smul.u32 7, %s80
    %s82 = sadd.s32 0, 0
    %p83 = scmp.lt.s32.totalorder %s82, 0
    %s84 = scalar_select %p83, %s82, 0
    %s85 = smul.u32 7, %s84
    %p86 = scmp.eq.s32.totalorder 0, 0
    // Predicated region
    $region26: #{tpu_custom_call.1} parent=1 // pred_check
      %p87 = pneg %p86
    $region27: #{tpu_custom_call.1} parent=1 // pred_check_branch
      %89 = sbr.rel (%p87) target = $region29
    $region28: #{tpu_custom_call.1} parent=1 // pred_region
      %90 = vst [vmem:[#allocation2] sm:$0xff] 0.0
      %91 = vst [vmem:[#allocation3] sm:$0xff] 0.0
    $region29: #{tpu_custom_call.1} parent=1 // pred_fallthru
      _
    %v92 = vld [vmem:[#allocation9] sm:$0xff]
    %v93 = vld [vmem:[#allocation9 + $0x8] sm:$0xff]
    %v94 = vld [vmem:[#allocation9 + $0x10] sm:$0xff]
    %v95 = vld [vmem:[#allocation9 + $0x18] sm:$0xff]
    %v96 = vld [vmem:[#allocation9 + $0x20] sm:$0xff]
    %v97 = vld [vmem:[#allocation9 + $0x28] sm:$0xff]
    %v98 = vld [vmem:[#allocation9 + $0x30] sm:$0xff]
    %v99 = vld [vmem:[#allocation4] sm:$0xff]
    %v100 = vld [vmem:[#allocation4 + $0x8] sm:$0xff]
    %v101 = vld [vmem:[#allocation4 + $0x10] sm:$0xff]
    %v102 = vld [vmem:[#allocation4 + $0x18] sm:$0xff]
    %v103 = vld [vmem:[#allocation4 + $0x20] sm:$0xff]
    %v104 = vld [vmem:[#allocation4 + $0x28] sm:$0xff]
    %v105 = vld [vmem:[#allocation4 + $0x30] sm:$0xff]
    %v106 = vsub.f32 %v99, %v92
    %v107 = vsub.f32 %v100, %v93
    %v108 = vsub.f32 %v101, %v94
    %v109 = vsub.f32 %v102, %v95
    %v110 = vsub.f32 %v103, %v96
    %v111 = vsub.f32 %v104, %v97
    %v112 = vsub.f32 %v105, %v98
    %v113 = vld [vmem:[#allocation7] sm:$0xff]
    %v114 = vld [vmem:[#allocation7 + $0x8] sm:$0xff]
    %v115 = vld [vmem:[#allocation7 + $0x10] sm:$0xff]
    %v116 = vld [vmem:[#allocation7 + $0x18] sm:$0xff]
    %v117 = vld [vmem:[#allocation7 + $0x20] sm:$0xff]
    %v118 = vld [vmem:[#allocation7 + $0x28] sm:$0xff]
    %v119 = vld [vmem:[#allocation7 + $0x30] sm:$0xff]
    %v120 = vsub.f32 %v113, %v92
    %v121 = vsub.f32 %v114, %v93
    %v122 = vsub.f32 %v115, %v94
    %v123 = vsub.f32 %v116, %v95
    %v124 = vsub.f32 %v117, %v96
    %v125 = vsub.f32 %v118, %v97
    %v126 = vsub.f32 %v119, %v98
    %v127 = vld [vmem:[#allocation2] sm:$0xff]
    %v128 = vmul.f32 %v106, %v106
    %v129 = vmul.f32 %v107, %v107
    %v130 = vmul.f32 %v108, %v108
    %v131 = vmul.f32 %v109, %v109
    %v132 = vmul.f32 %v110, %v110
    %v133 = vmul.f32 %v111, %v111
    %v134 = vmul.f32 %v112, %v112
    %v135 = vadd.f32 %v128, %v129
    %v136 = vadd.f32 %v135, %v130
    %v137 = vadd.f32 %v136, %v131
    %v138 = vadd.f32 %v137, %v132
    %v139 = vadd.f32 %v138, %v133
    %v140 = vadd.f32 %v139, %v134
    %v141 = vadd.f32 %v127, %v140
    %142 = vst [vmem:[#allocation2] sm:$0xff] %v141
    %v143 = vld [vmem:[#allocation3] sm:$0xff]
    %v144 = vmul.f32 %v120, %v120
    %v145 = vmul.f32 %v121, %v121
    %v146 = vmul.f32 %v122, %v122
    %v147 = vmul.f32 %v123, %v123
    %v148 = vmul.f32 %v124, %v124
    %v149 = vmul.f32 %v125, %v125
    %v150 = vmul.f32 %v126, %v126
    %v151 = vadd.f32 %v144, %v145
    %v152 = vadd.f32 %v151, %v146
    %v153 = vadd.f32 %v152, %v147
    %v154 = vadd.f32 %v153, %v148
    %v155 = vadd.f32 %v154, %v149
    %v156 = vadd.f32 %v155, %v150
    %v157 = vadd.f32 %v143, %v156
    %158 = vst [vmem:[#allocation3] sm:$0xff] %v157
    // Predicated region
    $region30: #{tpu_custom_call.1} parent=1 // pred_check
      %p159 = pneg %p86
    $region31: #{tpu_custom_call.1} parent=1 // pred_check_branch
      %161 = sbr.rel (%p159) target = $region33
    $region32: #{tpu_custom_call.1} parent=1 // pred_region
      %v162 = vld [vmem:[#allocation2] sm:$0xff]
      %163 = vadd.xlane.f32.xlu0 %v162
      %v164 = vpop.xlane.xlu0 %163
      %v165 = vrot.slane %v164, 4
      %v166 = vadd.f32 %v164, %v165
      %v167 = vrot.slane %v166, 2
      %v168 = vadd.f32 %v166, %v167
      %v169 = vrot.slane %v168, 1
      %v170 = vadd.f32 %v168, %v169
      %s171 = vtos %v170
      %s172 = scalar_lea.smem [#allocation10], 0
      %173 = sst [smem:[%s172]] %s171
      %v174 = vld [vmem:[#allocation3] sm:$0xff]
      %175 = vadd.xlane.f32.xlu0 %v174
      %v176 = vpop.xlane.xlu0 %175
      %v177 = vrot.slane %v176, 4
      %v178 = vadd.f32 %v176, %v177
      %v179 = vrot.slane %v178, 2
      %v180 = vadd.f32 %v178, %v179
      %v181 = vrot.slane %v180, 1
      %v182 = vadd.f32 %v180, %v181
      %s183 = vtos %v182
      %s184 = scalar_lea.smem [#allocation10], 1
      %185 = sst [smem:[%s184]] %s183
    $region33: #{tpu_custom_call.1} parent=1 // pred_fallthru
      _
    // Predicated region
    $region34: #{tpu_custom_call.1} parent=1 // pred_check
      _
    $region35: #{tpu_custom_call.1} parent=1 // pred_check_branch
      %187 = sbr.rel (0) target = $region37
    $region36: #{tpu_custom_call.1} parent=1 // pred_region
      %s189 = ssub.s32 16, 16
      %190 = vsyncadd [#allocation6], %s189
      %193 = dma.smem_to_hbm [#allocation10], 16, %s3, [#allocation6]
    $region37: #{tpu_custom_call.1} parent=1 // pred_fallthru
      _
    // Predicated region
    $region38: #{tpu_custom_call.1} parent=1 // pred_check
      _
    $region39: #{tpu_custom_call.1} parent=1 // pred_check_branch
      %195 = sbr.rel (0) target = $region41
    $region40: #{tpu_custom_call.1} parent=1 // pred_region
      %196 = dma.done [#allocation6], 16
    $region41: #{tpu_custom_call.1} parent=1 // pred_fallthru
      _
    %197 = sfence
    %198 = vsyncpa [#allocation5], 1
    %199 = vsyncpa [#allocation8], 1
    %200 = vsyncpa [#allocation6], 1

</llo_original>
